<compile_context>
chip_gen: v6e
topology: v6e:2x2x1
jax: 0.10.0
libtpu: 0.0.40
codegen_flags: <defaults>
</compile_context>

<pallas_src>
import jax
import jax.numpy as jnp
from jax.experimental import pallas as pl
from jax.experimental.pallas import tpu as pltpu

# Max lanes per batch tile. Working set at this size (in + out tiles double-buffered plus
# a handful of (tb//128, 128) f32 temporaries) is ~12 MiB -> safe on v5e/v6e/v7x.
_TB_MAX = 256 * 1024
_VMEM_LIMIT = 32 * 1024 * 1024


def _round_up(n, m):
    return ((n + m - 1) // m) * m


def _pick_tb(batch):
    # Tile must be a multiple of 1024 so tb//128 is a multiple of 8 sublanes.
    tb = min(_TB_MAX, _round_up(max(batch, 1), 1024))
    # Prefer >=2 grid steps once tiles are big enough to amortize per-step overhead,
    # so the "parallel" grid axis can shard across both TensorCores on v7x.
    if batch >= 16384 and _round_up(batch, tb) // tb < 2:
        tb = _round_up(-(-batch // 2), 1024)
    return tb


def mlp_kernel(w1h_ref, w2h_ref, x_ref, o_ref):
    """One batch tile, batch on (sublane, lane) = (tb//128, 128) dense planes.

    w1h_ref: (3, 2) f32 in SMEM -- 0.5 * Linear(2, 3).weight
    w2h_ref: (2, 3) f32 in SMEM -- 0.5 * Linear(3, 2).weight
    x_ref  : (2, S, 128) f32 in VMEM, S = tb // 128 -- feature-major input planes
    o_ref  : (2, S, 128) f32 in VMEM                -- feature-major output planes
    """
    x0 = x_ref[0]  # (S, 128), fully dense vregs
    x1 = x_ref[1]

    # Layer 1 (Linear 2->3, no bias), pre-scaled by 0.5 in the wrapper, then the exact
    # sigmoid as 0.5*(tanh(h/2)+1): one EUP tanh per hidden unit, no negates.
    # t_j = tanh(0.5*h_j) + 1  =>  sigmoid(h_j) = 0.5 * t_j (the 0.5 is folded into w2h).
    t0 = jnp.tanh(x0 * w1h_ref[0, 0] + x1 * w1h_ref[0, 1]) + 1.0
    t1 = jnp.tanh(x0 * w1h_ref[1, 0] + x1 * w1h_ref[1, 1]) + 1.0
    t2 = jnp.tanh(x0 * w1h_ref[2, 0] + x1 * w1h_ref[2, 1]) + 1.0

    # Layer 2 (Linear 3->2, no bias): y_r = sum_j sigmoid(h_j) * w2[r, j]
    #                                      = sum_j t_j * (0.5 * w2[r, j]).
    o_ref[0] = t0 * w2h_ref[0, 0] + t1 * w2h_ref[0, 1] + t2 * w2h_ref[0, 2]
    o_ref[1] = t0 * w2h_ref[1, 0] + t1 * w2h_ref[1, 1] + t2 * w2h_ref[1, 2]


def _mlp_call(xt_pad, w1, w2, tb):
    """xt_pad: (2, B_pad) f32 feature-major, B_pad % tb == 0, tb % 1024 == 0."""
    b_pad = xt_pad.shape[1]
    s = tb // 128
    x_planes = xt_pad.reshape(2, b_pad // 128, 128)  # zero-copy reshape (contiguous)

    y_planes = pl.pallas_call(
        mlp_kernel,
        out_shape=jax.ShapeDtypeStruct((2, b_pad // 128, 128), jnp.float32),
        grid=(b_pad // tb,),
        in_specs=[
            pl.BlockSpec(memory_space=pltpu.MemorySpace.SMEM),  # 0.5*w1: 6 floats, resident
            pl.BlockSpec(memory_space=pltpu.MemorySpace.SMEM),  # 0.5*w2: 6 floats, resident
            pl.BlockSpec((2, s, 128), lambda i: (0, i, 0)),      # sublane+lane dense x tile
        ],
        out_specs=pl.BlockSpec((2, s, 128), lambda i: (0, i, 0)),
        compiler_params=pltpu.CompilerParams(
            dimension_semantics=("parallel",),      # independent batch tiles -> both TCs on v7x
            vmem_limit_bytes=_VMEM_LIMIT,           # covers v5e's 16 MiB scoped default
        ),
    )(
        (0.5 * w1).astype(jnp.float32),
        (0.5 * w2).astype(jnp.float32),
        x_planes,
    )
    return y_planes.reshape(2, b_pad)


def mlp_forward_feature_major(xt, w1, w2, tb=None):
    """Feature-major entry: xt is (2, B); avoids the transpose HBM passes entirely."""
    B = xt.shape[1]
    if tb is None:
        tb = _pick_tb(B)
    b_pad = _round_up(B, tb)
    xt_pad = jnp.pad(xt.astype(jnp.float32), ((0, 0), (0, b_pad - B)))
    return _mlp_call(xt_pad, w1, w2, tb)[:, :B]


def mlp_forward(x, w1, w2, tb=None):
    """PyTorch-convention entry: x is (B, 2), w1 is (3, 2), w2 is (2, 3); returns (B, 2).

    The transpose here is interface glue only; callers that already hold a feature-major
    (2, B) layout should use mlp_forward_feature_major and skip both HBM transpose passes.
    """
    B = x.shape[0]
    yt = mlp_forward_feature_major(x.astype(jnp.float32).T, w1, w2, tb=tb)
    return yt.T  # back to (B, 2); padded rows were already sliced off


if __name__ == "__main__":
    # Deterministic parameters exactly as in the PyTorch module's __init__.
    w1 = jnp.array([[1.0, 2.0],
                    [0.5, 1.2],
                    [-0.5, 1.0]], dtype=jnp.float32)        # Linear(2, 3).weight
    w2 = jnp.array([[-0.5, 1.0, 0.5],
                    [1.0, -0.5, 0.2]], dtype=jnp.float32)   # Linear(3, 2).weight

    # Small deterministic input: batch=8, in_features=2.
    key = jax.random.PRNGKey(0)
    x = jax.random.normal(key, (8, 2), dtype=jnp.float32)

    out = jax.block_until_ready(mlp_forward(x, w1, w2))

    # Pure-JAX reference mirroring the PyTorch forward exactly.
    ref = jax.nn.sigmoid(x @ w1.T) @ w2.T
    assert out.shape == ref.shape, (out.shape, ref.shape)
    assert jnp.allclose(out, ref, atol=1e-5, rtol=1e-5), (out, ref)

    # The feature-major entry point (no transpose HBM passes) must agree too.
    out_fm = jax.block_until_ready(mlp_forward_feature_major(x.T, w1, w2))
    assert jnp.allclose(out_fm, ref.T, atol=1e-5, rtol=1e-5), (out_fm, ref.T)

    print("KERNEL_OK")
</pallas_src>

<mosaic_0001>
module attributes {stable_mosaic.version = 11 : i64} {
  func.func @mlp_kernel(%arg0: i32, %arg1: memref<3x2xf32, #tpu.memory_space<smem>>, %arg2: memref<2x3xf32, #tpu.memory_space<smem>>, %arg3: memref<2x8x128xf32, #tpu.memory_space<vmem>>, %arg4: memref<2x8x128xf32, #tpu.memory_space<vmem>>) attributes {dimension_semantics = [#tpu.dimension_semantics<parallel>], iteration_bounds = array<i64: 1>, scalar_prefetch = 0 : i64, scratch_operands = 0 : i64, tpu.core_type = #tpu.core_type<tc>, window_params = [{transform_indices = @transform_0, window_bounds = array<i64: 3, 2>}, {transform_indices = @transform_1, window_bounds = array<i64: 2, 3>}, {transform_indices = @transform_2, window_bounds = array<i64: 2, 8, 128>}, {transform_indices = @transform_3, window_bounds = array<i64: 2, 8, 128>}]} {
    %c0 = arith.constant 0 : index
    %c0_0 = arith.constant 0 : index
    %c0_1 = arith.constant 0 : index
    %0 = vector.load %arg3[%c0, %c0_0, %c0_1] : memref<2x8x128xf32, #tpu.memory_space<vmem>>, vector<1x8x128xf32>
    %1 = vector.shape_cast %0 : vector<1x8x128xf32> to vector<8x128xf32>
    %c1 = arith.constant 1 : index
    %c0_2 = arith.constant 0 : index
    %c0_3 = arith.constant 0 : index
    %2 = vector.load %arg3[%c1, %c0_2, %c0_3] : memref<2x8x128xf32, #tpu.memory_space<vmem>>, vector<1x8x128xf32>
    %3 = vector.shape_cast %2 : vector<1x8x128xf32> to vector<8x128xf32>
    %c0_4 = arith.constant 0 : index
    %c0_5 = arith.constant 0 : index
    %4 = memref.load %arg1[%c0_4, %c0_5] : memref<3x2xf32, #tpu.memory_space<smem>>
    %5 = vector.broadcast %4 : f32 to vector<8x128xf32>
    %6 = arith.mulf %1, %5 : vector<8x128xf32>
    %c0_6 = arith.constant 0 : index
    %c1_7 = arith.constant 1 : index
    %7 = memref.load %arg1[%c0_6, %c1_7] : memref<3x2xf32, #tpu.memory_space<smem>>
    %8 = vector.broadcast %7 : f32 to vector<8x128xf32>
    %9 = arith.mulf %3, %8 : vector<8x128xf32>
    %10 = arith.addf %6, %9 : vector<8x128xf32>
    %11 = math.tanh %10 : vector<8x128xf32>
    %cst = arith.constant 1.000000e+00 : f32
    %12 = vector.broadcast %cst : f32 to vector<8x128xf32>
    %13 = arith.addf %11, %12 : vector<8x128xf32>
    %c1_8 = arith.constant 1 : index
    %c0_9 = arith.constant 0 : index
    %14 = memref.load %arg1[%c1_8, %c0_9] : memref<3x2xf32, #tpu.memory_space<smem>>
    %15 = vector.broadcast %14 : f32 to vector<8x128xf32>
    %16 = arith.mulf %1, %15 : vector<8x128xf32>
    %c1_10 = arith.constant 1 : index
    %c1_11 = arith.constant 1 : index
    %17 = memref.load %arg1[%c1_10, %c1_11] : memref<3x2xf32, #tpu.memory_space<smem>>
    %18 = vector.broadcast %17 : f32 to vector<8x128xf32>
    %19 = arith.mulf %3, %18 : vector<8x128xf32>
    %20 = arith.addf %16, %19 : vector<8x128xf32>
    %21 = math.tanh %20 : vector<8x128xf32>
    %cst_12 = arith.constant 1.000000e+00 : f32
    %22 = vector.broadcast %cst_12 : f32 to vector<8x128xf32>
    %23 = arith.addf %21, %22 : vector<8x128xf32>
    %c2 = arith.constant 2 : index
    %c0_13 = arith.constant 0 : index
    %24 = memref.load %arg1[%c2, %c0_13] : memref<3x2xf32, #tpu.memory_space<smem>>
    %25 = vector.broadcast %24 : f32 to vector<8x128xf32>
    %26 = arith.mulf %1, %25 : vector<8x128xf32>
    %c2_14 = arith.constant 2 : index
    %c1_15 = arith.constant 1 : index
    %27 = memref.load %arg1[%c2_14, %c1_15] : memref<3x2xf32, #tpu.memory_space<smem>>
    %28 = vector.broadcast %27 : f32 to vector<8x128xf32>
    %29 = arith.mulf %3, %28 : vector<8x128xf32>
    %30 = arith.addf %26, %29 : vector<8x128xf32>
    %31 = math.tanh %30 : vector<8x128xf32>
    %cst_16 = arith.constant 1.000000e+00 : f32
    %32 = vector.broadcast %cst_16 : f32 to vector<8x128xf32>
    %33 = arith.addf %31, %32 : vector<8x128xf32>
    %c0_17 = arith.constant 0 : index
    %c0_18 = arith.constant 0 : index
    %34 = memref.load %arg2[%c0_17, %c0_18] : memref<2x3xf32, #tpu.memory_space<smem>>
    %35 = vector.broadcast %34 : f32 to vector<8x128xf32>
    %36 = arith.mulf %13, %35 : vector<8x128xf32>
    %c0_19 = arith.constant 0 : index
    %c1_20 = arith.constant 1 : index
    %37 = memref.load %arg2[%c0_19, %c1_20] : memref<2x3xf32, #tpu.memory_space<smem>>
    %38 = vector.broadcast %37 : f32 to vector<8x128xf32>
    %39 = arith.mulf %23, %38 : vector<8x128xf32>
    %40 = arith.addf %36, %39 : vector<8x128xf32>
    %c0_21 = arith.constant 0 : index
    %c2_22 = arith.constant 2 : index
    %41 = memref.load %arg2[%c0_21, %c2_22] : memref<2x3xf32, #tpu.memory_space<smem>>
    %42 = vector.broadcast %41 : f32 to vector<8x128xf32>
    %43 = arith.mulf %33, %42 : vector<8x128xf32>
    %44 = arith.addf %40, %43 : vector<8x128xf32>
    %c0_23 = arith.constant 0 : index
    %c0_24 = arith.constant 0 : index
    %c0_25 = arith.constant 0 : index
    %45 = vector.load %arg4[%c0_23, %c0_24, %c0_25] : memref<2x8x128xf32, #tpu.memory_space<vmem>>, vector<1x8x128xf32>
    %46 = vector.shape_cast %45 : vector<1x8x128xf32> to vector<8x128xf32>
    %47 = vector.shape_cast %44 : vector<8x128xf32> to vector<1x8x128xf32>
    tpu.vector_store %arg4[%c0_23, %c0_24, %c0_25], %47 {strides = array<i32>} : memref<2x8x128xf32, #tpu.memory_space<vmem>>, vector<1x8x128xf32>,
    %c1_26 = arith.constant 1 : index
    %c0_27 = arith.constant 0 : index
    %48 = memref.load %arg2[%c1_26, %c0_27] : memref<2x3xf32, #tpu.memory_space<smem>>
    %49 = vector.broadcast %48 : f32 to vector<8x128xf32>
    %50 = arith.mulf %13, %49 : vector<8x128xf32>
    %c1_28 = arith.constant 1 : index
    %c1_29 = arith.constant 1 : index
    %51 = memref.load %arg2[%c1_28, %c1_29] : memref<2x3xf32, #tpu.memory_space<smem>>
    %52 = vector.broadcast %51 : f32 to vector<8x128xf32>
    %53 = arith.mulf %23, %52 : vector<8x128xf32>
    %54 = arith.addf %50, %53 : vector<8x128xf32>
    %c1_30 = arith.constant 1 : index
    %c2_31 = arith.constant 2 : index
    %55 = memref.load %arg2[%c1_30, %c2_31] : memref<2x3xf32, #tpu.memory_space<smem>>
    %56 = vector.broadcast %55 : f32 to vector<8x128xf32>
    %57 = arith.mulf %33, %56 : vector<8x128xf32>
    %58 = arith.addf %54, %57 : vector<8x128xf32>
    %c1_32 = arith.constant 1 : index
    %c0_33 = arith.constant 0 : index
    %c0_34 = arith.constant 0 : index
    %59 = vector.load %arg4[%c1_32, %c0_33, %c0_34] : memref<2x8x128xf32, #tpu.memory_space<vmem>>, vector<1x8x128xf32>
    %60 = vector.shape_cast %59 : vector<1x8x128xf32> to vector<8x128xf32>
    %61 = vector.shape_cast %58 : vector<8x128xf32> to vector<1x8x128xf32>
    tpu.vector_store %arg4[%c1_32, %c0_33, %c0_34], %61 {strides = array<i32>} : memref<2x8x128xf32, #tpu.memory_space<vmem>>, vector<1x8x128xf32>,
    return
  }
  func.func @transform_0(%arg0: i32) -> (i32, i32) {
    %c0_i32 = arith.constant 0 : i32
    %c0_i32_0 = arith.constant 0 : i32
    %c0_i32_1 = arith.constant 0 : i32
    return %c0_i32, %c0_i32_0 : i32, i32
  }
  func.func @transform_1(%arg0: i32) -> (i32, i32) {
    %c0_i32 = arith.constant 0 : i32
    %c0_i32_0 = arith.constant 0 : i32
    %c0_i32_1 = arith.constant 0 : i32
    return %c0_i32, %c0_i32_0 : i32, i32
  }
  func.func @transform_2(%arg0: i32) -> (i32, i32, i32) {
    %c0_i32 = arith.constant 0 : i32
    %c0_i32_0 = arith.constant 0 : i32
    %c0_i32_1 = arith.constant 0 : i32
    return %c0_i32, %arg0, %c0_i32_0 : i32, i32, i32
  }
  func.func @transform_3(%arg0: i32) -> (i32, i32, i32) {
    %c0_i32 = arith.constant 0 : i32
    %c0_i32_0 = arith.constant 0 : i32
    %c0_i32_1 = arith.constant 0 : i32
    return %c0_i32, %arg0, %c0_i32_0 : i32, i32, i32
  }
}

</mosaic_0001>

<llo_original>
// kernel: tpu_custom_call.1
$region0: #{tpu_custom_call.1}
  #allocation0 [shape = 'u32[]', space=smem, size = 0x4, offset = 0x4, fixed_abs, tag = 'smem constant byte address 0x4 - core index']
  #allocation1 [shape = 'u32[144,128]{1,0:T(1,128)}', space=vmem, size = 0x12000, scoped, tag = 'internal scratch']
  %s0 = inlined_call_operand.vmem [shape: f32[3,2], index: 0, kind: input, shape index: {}]
  %s1 = inlined_call_operand.vmem [shape: f32[2,3], index: 1, kind: input, shape index: {}]
  %s2 = inlined_call_operand.hbm [shape: f32[2,8,128], index: 2, kind: input, shape index: {}]
  %s3 = inlined_call_operand.hbm [shape: f32[2,8,128], index: 3, kind: output, shape index: {}]
  %s4 = sld [smem:[#allocation0]]
  $region34: #{tpu_custom_call.1} parent=0
    _
  %s6 = ssub.s32 1, %s4
  %s7 = scalar_select 0, %s6, %s4
  $region1: #{tpu_custom_call.1} parent=0
    #allocation2 [shape = 'u8[2048]{0}', space=smem, size = 0x800, scoped, tag = 'input window, operand 0, single buffered']
    #allocation3 [shape = 's32[1]{0}', space=sflag, size = 0x4, scoped, tag = 'scoped memory for tpu_custom_call.1']
    #allocation4 [shape = 's32[1]{0}', space=sflag, size = 0x4, scoped, tag = 'scoped memory for tpu_custom_call.1']
    #allocation5 [shape = 's32[1]{0}', space=sflag, size = 0x4, scoped, tag = 'scoped memory for tpu_custom_call.1']
    #allocation6 [shape = 'u8[1024]{0}', space=smem, size = 0x400, scoped, tag = 'input window, operand 1, single buffered']
    #allocation7 [shape = 's32[1]{0}', space=sflag, size = 0x4, scoped, tag = 'scoped memory for tpu_custom_call.1']
    #allocation8 [shape = 'u8[8192]{0}', space=vmem, size = 0x2000, scoped, tag = 'input window, operand 2, single buffered']
    #allocation9 [shape = 'u8[8192]{0}', space=vmem, size = 0x2000, scoped, tag = 'output window, operand 0, single buffered']
    %8 = vsyncpa [#allocation5], 0
    %9 = vsyncpa [#allocation7], 0
    %10 = vsyncpa [#allocation3], 0
    %11 = vsyncpa [#allocation4], 0
    // Predicated region
    $region2: #{tpu_custom_call.1} parent=1 // pred_check
      _
    $region3: #{tpu_custom_call.1} parent=1 // pred_check_branch
      %13 = sbr.rel (0) target = $region5
    $region4: #{tpu_custom_call.1} parent=1 // pred_region
      %s15 = ssub.s32 64, 64
      %16 = vsyncadd [#allocation5], %s15
      %s18 = sshll.u32 %s0, 4
      %s19 = int_to_ptr.vmem [resolvable:$true] %s18
      %21 = dma.vmem_to_smem %s19, 64, [#allocation2], [#allocation5]
    $region5: #{tpu_custom_call.1} parent=1 // pred_fallthru
      _
    // Predicated region
    $region6: #{tpu_custom_call.1} parent=1 // pred_check
      _
    $region7: #{tpu_custom_call.1} parent=1 // pred_check_branch
      %23 = sbr.rel (0) target = $region9
    $region8: #{tpu_custom_call.1} parent=1 // pred_region
      %s25 = ssub.s32 32, 32
      %26 = vsyncadd [#allocation7], %s25
      %s28 = sshll.u32 %s1, 4
      %s29 = int_to_ptr.vmem [resolvable:$true] %s28
      %31 = dma.vmem_to_smem %s29, 32, [#allocation6], [#allocation7]
    $region9: #{tpu_custom_call.1} parent=1 // pred_fallthru
      _
    // Predicated region
    $region10: #{tpu_custom_call.1} parent=1 // pred_check
      _
    $region11: #{tpu_custom_call.1} parent=1 // pred_check_branch
      %33 = sbr.rel (0) target = $region13
    $region12: #{tpu_custom_call.1} parent=1 // pred_region
      %s35 = ssub.s32 256, 256
      %36 = vsyncadd [#allocation3], %s35
      %s37 = sshll.u32 [#allocation8], 4
      %s38 = int_to_ptr.vmem [resolvable:$true] %s37
      %43 = dma.hbm_to_vmem [thread:$0]  %s2, 256, %s38, [#allocation3], 128, 128, 8
    $region13: #{tpu_custom_call.1} parent=1 // pred_fallthru
      _
    // Predicated region
    $region14: #{tpu_custom_call.1} parent=1 // pred_check
      _
    $region15: #{tpu_custom_call.1} parent=1 // pred_check_branch
      %45 = sbr.rel (0) target = $region17
    $region16: #{tpu_custom_call.1} parent=1 // pred_region
      %46 = dma.done [#allocation5], 64
    $region17: #{tpu_custom_call.1} parent=1 // pred_fallthru
      _
    // Predicated region
    $region18: #{tpu_custom_call.1} parent=1 // pred_check
      _
    $region19: #{tpu_custom_call.1} parent=1 // pred_check_branch
      %48 = sbr.rel (0) target = $region21
    $region20: #{tpu_custom_call.1} parent=1 // pred_region
      %49 = dma.done [#allocation7], 32
    $region21: #{tpu_custom_call.1} parent=1 // pred_fallthru
      _
    // Predicated region
    $region22: #{tpu_custom_call.1} parent=1 // pred_check
      _
    $region23: #{tpu_custom_call.1} parent=1 // pred_check_branch
      %51 = sbr.rel (0) target = $region25
    $region24: #{tpu_custom_call.1} parent=1 // pred_region
      %52 = dma.done [#allocation3], 256
    $region25: #{tpu_custom_call.1} parent=1 // pred_fallthru
      _
    %53 = sfence
    %v54 = vld [vmem:[#allocation8] sm:$0xff]
    %s55 = scalar_lea.vmem [#allocation8], 8
    %v56 = vld [vmem:[%s55] sm:$0xff]
    %s57 = sld [smem:[#allocation2]]
    %v58 = vstv %s57
    %v59 = vmul.f32 %v54, %v58
    %s60 = sld [smem:[#allocation2 + $0x1]]
    %v61 = vstv %s60
    %v62 = vmul.f32 %v56, %v61
    %v63 = vadd.f32 %v59, %v62
    %v64 = vtanh.pop %v63
    %v65 = vadd.f32 %v64, 1.0
    %s66 = sld [smem:[#allocation2 + $0x80]]
    %v67 = vstv %s66
    %v68 = vmul.f32 %v54, %v67
    %s69 = sld [smem:[#allocation2 + $0x81]]
    %v70 = vstv %s69
    %v71 = vmul.f32 %v56, %v70
    %v72 = vadd.f32 %v68, %v71
    %v73 = vtanh.pop %v72
    %v74 = vadd.f32 %v73, 1.0
    %s75 = sld [smem:[#allocation2 + $0x100]]
    %v76 = vstv %s75
    %v77 = vmul.f32 %v54, %v76
    %s78 = sld [smem:[#allocation2 + $0x101]]
    %v79 = vstv %s78
    %v80 = vmul.f32 %v56, %v79
    %v81 = vadd.f32 %v77, %v80
    %v82 = vtanh.pop %v81
    %v83 = vadd.f32 %v82, 1.0
    %s84 = sld [smem:[#allocation6]]
    %v85 = vstv %s84
    %v86 = vmul.f32 %v65, %v85
    %s87 = sld [smem:[#allocation6 + $0x1]]
    %v88 = vstv %s87
    %v89 = vmul.f32 %v74, %v88
    %v90 = vadd.f32 %v86, %v89
    %s91 = sld [smem:[#allocation6 + $0x2]]
    %v92 = vstv %s91
    %v93 = vmul.f32 %v83, %v92
    %v94 = vadd.f32 %v90, %v93
    %95 = vst [vmem:[#allocation9] sm:$0xff] %v94
    %s96 = sld [smem:[#allocation6 + $0x80]]
    %v97 = vstv %s96
    %v98 = vmul.f32 %v65, %v97
    %s99 = sld [smem:[#allocation6 + $0x81]]
    %v100 = vstv %s99
    %v101 = vmul.f32 %v74, %v100
    %v102 = vadd.f32 %v98, %v101
    %s103 = sld [smem:[#allocation6 + $0x82]]
    %v104 = vstv %s103
    %v105 = vmul.f32 %v83, %v104
    %v106 = vadd.f32 %v102, %v105
    %s107 = scalar_lea.vmem [#allocation9], 8
    %108 = vst [vmem:[%s107] sm:$0xff] %v106
    // Predicated region
    $region26: #{tpu_custom_call.1} parent=1 // pred_check
      _
    $region27: #{tpu_custom_call.1} parent=1 // pred_check_branch
      %110 = sbr.rel (0) target = $region29
    $region28: #{tpu_custom_call.1} parent=1 // pred_region
      %s112 = ssub.s32 256, 256
      %113 = vsyncadd [#allocation4], %s112
      %s114 = sshll.u32 [#allocation9], 4
      %s115 = int_to_ptr.vmem [resolvable:$true] %s114
      %120 = dma.vmem_to_hbm [thread:$0]  %s115, 256, %s3, [#allocation4], 128, 128, 8
    $region29: #{tpu_custom_call.1} parent=1 // pred_fallthru
      _
    // Predicated region
    $region30: #{tpu_custom_call.1} parent=1 // pred_check
      _
    $region31: #{tpu_custom_call.1} parent=1 // pred_check_branch
      %122 = sbr.rel (0) target = $region33
    $region32: #{tpu_custom_call.1} parent=1 // pred_region
      %123 = dma.done [#allocation4], 256
    $region33: #{tpu_custom_call.1} parent=1 // pred_fallthru
      _
    %124 = vsyncpa [#allocation3], 1
    %125 = vsyncpa [#allocation4], 1
    %126 = vsyncpa [#allocation5], 1
    %127 = vsyncpa [#allocation7], 1

</llo_original>
